<compile_context>
chip_gen: v7x
topology: tpu7x:2x2x1
jax: 0.10.0
libtpu: 0.0.40
codegen_flags: <defaults>
</compile_context>

<pallas_src>
import functools

import jax
import jax.numpy as jnp
from jax.experimental import pallas as pl
from jax.experimental.pallas import tpu as pltpu

LANE = 128
SUBLANE = 8
TC_MAX = 32  # max time-slices unrolled per grid step (bounds trace size)


def _round_up(v, m):
    return ((v + m - 1) // m) * m


def _chip_config():
    """Per-chip (target_block_bytes, row_axis_semantics, two_tensorcores)."""
    try:
        kind = jax.devices()[0].device_kind.lower()
    except Exception:
        kind = ""
    if "v7" in kind:
        # v7x: ~3.2 TB/s HBM -> big tiles; 2 TCs -> core-parallel row axis.
        return (8 << 20), pltpu.CORE_PARALLEL, True
    if "v6" in kind:
        # v6e: ~1.4 TB/s HBM, 128 MiB VMEM -> 8 MiB tiles are comfortable.
        return (8 << 20), pltpu.PARALLEL, False
    # v5e (16 MiB default scoped VMEM) and unknown chips: stay at 4 MiB.
    return (4 << 20), pltpu.PARALLEL, False


def _mean_t_kernel(x_ref, o_ref, acc_ref, *, inv_t, tc, T, ragged):
    """x_ref: (tc, tm, LANE) block; o_ref: (tm, LANE); acc_ref: (tm, LANE) f32.

    Accumulates per-t slices in f32 (no full-block f32 temp), init at the
    first T-chunk, scale + downcast + store at the last T-chunk.
    """
    k = pl.program_id(1)

    @pl.when(k == 0)
    def _init():
        acc_ref[...] = jnp.zeros_like(acc_ref)

    acc = acc_ref[...]
    if ragged:
        base = k * tc
        for t in range(tc):
            x = x_ref[t].astype(jnp.float32)
            # Mask time-slices that fall beyond T in the (padded) last chunk.
            acc = acc + jnp.where(base + t < T, x, 0.0)
    else:
        for t in range(tc):
            acc = acc + x_ref[t].astype(jnp.float32)
    acc_ref[...] = acc

    @pl.when(k == pl.num_programs(1) - 1)
    def _finalize():
        o_ref[...] = (acc_ref[...] * inv_t).astype(o_ref.dtype)


def _mean_over_t_dense(x3, out_dtype):
    """x3: (T, R, LANE) -> (R, LANE) mean over axis 0."""
    T, R, _ = x3.shape
    itemsize = jnp.dtype(x3.dtype).itemsize
    target_bytes, row_sem, two_core = _chip_config()

    packing = max(1, 4 // itemsize)      # f32: 1, bf16/fp16: 2, int8/fp8: 4
    sub = SUBLANE * packing              # dtype-native sublane multiple

    # --- time chunk: guards VMEM for large T (arbitrary reduction axis) ---
    max_tc_bytes = max(1, target_bytes // (sub * LANE * itemsize))
    tc = max(1, min(T, TC_MAX, max_tc_bytes))
    ragged = (T % tc) != 0

    # --- row tile: ~target_bytes per input block, dtype-aware rounding ---
    tm = target_bytes // (tc * LANE * itemsize)
    tm = max(sub, (tm // sub) * sub)
    if two_core and R > sub:
        # Ensure >= 2 row blocks so both TensorCores get work on v7x.
        tm = min(tm, _round_up((R + 1) // 2, sub))
    if tm >= R:
        tm = R  # full-extent block dim is always legal

    inv_t = 1.0 / float(T)
    block_bytes = tc * tm * LANE * itemsize
    grid = (pl.cdiv(R, tm), pl.cdiv(T, tc))

    cost = pl.CostEstimate(
        flops=int(T) * int(R) * LANE,
        transcendentals=0,
        bytes_accessed=(int(T) + 1) * int(R) * LANE * itemsize,
    )
    # 2x double-buffered input + output + f32 accumulator + compiler margin.
    vmem_limit = int(min(64 << 20, max(32 << 20, 3 * block_bytes + (4 << 20))))

    return pl.pallas_call(
        functools.partial(_mean_t_kernel, inv_t=inv_t, tc=tc, T=T,
                          ragged=ragged),
        out_shape=jax.ShapeDtypeStruct((R, LANE), out_dtype),
        grid_spec=pltpu.PrefetchScalarGridSpec(
            num_scalar_prefetch=0,
            grid=grid,
            in_specs=[pl.BlockSpec((tc, tm, LANE), lambda i, k: (k, i, 0))],
            out_specs=pl.BlockSpec((tm, LANE), lambda i, k: (i, 0)),
            scratch_shapes=[pltpu.VMEM((tm, LANE), jnp.float32)],
        ),
        compiler_params=pltpu.CompilerParams(
            dimension_semantics=(row_sem, pltpu.ARBITRARY),
            vmem_limit_bytes=vmem_limit,
        ),
        cost_estimate=cost,
    )(x3)


def ms_cancel_t_forward(x):
    """x: (T, *rest). Returns x.mean(0): shape = rest, dtype = x.dtype."""
    # TODO(synk): integer/bool inputs get a truncated mean on the final cast;
    # PyTorch .mean() would upcast/error.  Spike tensors here are float.
    T = x.shape[0]
    rest = x.shape[1:]
    M = 1
    for d in rest:
        M *= d

    x2 = x.reshape(T, M)
    Mp = _round_up(M, LANE)
    if Mp != M:
        # Pad-to-128 instead of a (1, tn) fallback: keeps output stores
        # unmasked and the reduction on the VPU.
        x2 = jnp.pad(x2, ((0, 0), (0, Mp - M)))

    out = _mean_over_t_dense(x2.reshape(T, Mp // LANE, LANE), x.dtype)
    out = out.reshape(Mp)
    if Mp != M:
        out = out[:M]
    return out.reshape(rest)


if __name__ == "__main__":
    key = jax.random.PRNGKey(0)

    # Spikformer-style input: (T, B, C, H, W).
    T, B, C, H, W = 8, 2, 4, 16, 16
    x = jax.random.normal(key, (T, B, C, H, W), dtype=jnp.float32)
    y = jax.block_until_ready(ms_cancel_t_forward(x))
    y_ref = jnp.mean(x, axis=0)
    assert y.shape == (B, C, H, W) and y.dtype == x.dtype
    assert jnp.allclose(y, y_ref, atol=1e-5, rtol=1e-5), "mismatch (dense path)"

    # Spatial size not a multiple of 128 -> exercises the pad-to-128 path.
    x2 = jax.random.normal(jax.random.PRNGKey(1), (3, 2, 5, 7, 9), jnp.float32)
    y2 = jax.block_until_ready(ms_cancel_t_forward(x2))
    assert jnp.allclose(y2, jnp.mean(x2, axis=0), atol=1e-5, rtol=1e-5), \
        "mismatch (padded path)"

    # T > TC_MAX with a ragged last chunk -> exercises the chunked/masked path.
    x3 = jax.random.normal(jax.random.PRNGKey(2), (40, 1, 1, 8, 16), jnp.float32)
    y3 = jax.block_until_ready(ms_cancel_t_forward(x3))
    assert jnp.allclose(y3, jnp.mean(x3, axis=0), atol=1e-5, rtol=1e-5), \
        "mismatch (T-chunked path)"

    print("KERNEL_OK")
</pallas_src>

<mosaic_0001>
module attributes {stable_mosaic.version = 11 : i64} {
  func.func @_mean_t_kernel(%arg0: i32, %arg1: i32, %arg2: memref<8x16x128xf32, #tpu.memory_space<vmem>>, %arg3: memref<16x128xf32, #tpu.memory_space<vmem>>, %arg4: memref<16x128xf32, #tpu.memory_space<vmem>>) attributes {dimension_semantics = [#tpu.dimension_semantics<parallel>, #tpu.dimension_semantics<arbitrary>], iteration_bounds = array<i64: 1, 1>, scalar_prefetch = 0 : i64, scratch_operands = 1 : i64, tpu.core_type = #tpu.core_type<tc>, window_params = [{transform_indices = @transform_0, window_bounds = array<i64: 8, 16, 128>}, {transform_indices = @transform_1, window_bounds = array<i64: 16, 128>}]} {
    %c0_i32 = arith.constant 0 : i32
    %0 = arith.cmpi eq, %arg1, %c0_i32 : i32
    %1 = arith.extui %0 : i1 to i32
    %c0_i32_0 = arith.constant 0 : i32
    %2 = arith.cmpi ne, %1, %c0_i32_0 : i32
    scf.if %2 {
      %cst = arith.constant 0.000000e+00 : f32
      %32 = vector.broadcast %cst : f32 to vector<16x128xf32>
      %c0_23 = arith.constant 0 : index
      %c0_24 = arith.constant 0 : index
      %33 = vector.load %arg4[%c0_23, %c0_24] : memref<16x128xf32, #tpu.memory_space<vmem>>, vector<16x128xf32>
      tpu.vector_store %arg4[%c0_23, %c0_24], %32 {strides = array<i32>} : memref<16x128xf32, #tpu.memory_space<vmem>>, vector<16x128xf32>,
    } else {
    }
    %c0 = arith.constant 0 : index
    %c0_1 = arith.constant 0 : index
    %3 = vector.load %arg4[%c0, %c0_1] : memref<16x128xf32, #tpu.memory_space<vmem>>, vector<16x128xf32>
    %c0_2 = arith.constant 0 : index
    %c0_3 = arith.constant 0 : index
    %c0_4 = arith.constant 0 : index
    %4 = vector.load %arg2[%c0_2, %c0_3, %c0_4] : memref<8x16x128xf32, #tpu.memory_space<vmem>>, vector<1x16x128xf32>
    %5 = vector.shape_cast %4 : vector<1x16x128xf32> to vector<16x128xf32>
    %6 = arith.addf %3, %5 : vector<16x128xf32>
    %c1 = arith.constant 1 : index
    %c0_5 = arith.constant 0 : index
    %c0_6 = arith.constant 0 : index
    %7 = vector.load %arg2[%c1, %c0_5, %c0_6] : memref<8x16x128xf32, #tpu.memory_space<vmem>>, vector<1x16x128xf32>
    %8 = vector.shape_cast %7 : vector<1x16x128xf32> to vector<16x128xf32>
    %9 = arith.addf %6, %8 : vector<16x128xf32>
    %c2 = arith.constant 2 : index
    %c0_7 = arith.constant 0 : index
    %c0_8 = arith.constant 0 : index
    %10 = vector.load %arg2[%c2, %c0_7, %c0_8] : memref<8x16x128xf32, #tpu.memory_space<vmem>>, vector<1x16x128xf32>
    %11 = vector.shape_cast %10 : vector<1x16x128xf32> to vector<16x128xf32>
    %12 = arith.addf %9, %11 : vector<16x128xf32>
    %c3 = arith.constant 3 : index
    %c0_9 = arith.constant 0 : index
    %c0_10 = arith.constant 0 : index
    %13 = vector.load %arg2[%c3, %c0_9, %c0_10] : memref<8x16x128xf32, #tpu.memory_space<vmem>>, vector<1x16x128xf32>
    %14 = vector.shape_cast %13 : vector<1x16x128xf32> to vector<16x128xf32>
    %15 = arith.addf %12, %14 : vector<16x128xf32>
    %c4 = arith.constant 4 : index
    %c0_11 = arith.constant 0 : index
    %c0_12 = arith.constant 0 : index
    %16 = vector.load %arg2[%c4, %c0_11, %c0_12] : memref<8x16x128xf32, #tpu.memory_space<vmem>>, vector<1x16x128xf32>
    %17 = vector.shape_cast %16 : vector<1x16x128xf32> to vector<16x128xf32>
    %18 = arith.addf %15, %17 : vector<16x128xf32>
    %c5 = arith.constant 5 : index
    %c0_13 = arith.constant 0 : index
    %c0_14 = arith.constant 0 : index
    %19 = vector.load %arg2[%c5, %c0_13, %c0_14] : memref<8x16x128xf32, #tpu.memory_space<vmem>>, vector<1x16x128xf32>
    %20 = vector.shape_cast %19 : vector<1x16x128xf32> to vector<16x128xf32>
    %21 = arith.addf %18, %20 : vector<16x128xf32>
    %c6 = arith.constant 6 : index
    %c0_15 = arith.constant 0 : index
    %c0_16 = arith.constant 0 : index
    %22 = vector.load %arg2[%c6, %c0_15, %c0_16] : memref<8x16x128xf32, #tpu.memory_space<vmem>>, vector<1x16x128xf32>
    %23 = vector.shape_cast %22 : vector<1x16x128xf32> to vector<16x128xf32>
    %24 = arith.addf %21, %23 : vector<16x128xf32>
    %c7 = arith.constant 7 : index
    %c0_17 = arith.constant 0 : index
    %c0_18 = arith.constant 0 : index
    %25 = vector.load %arg2[%c7, %c0_17, %c0_18] : memref<8x16x128xf32, #tpu.memory_space<vmem>>, vector<1x16x128xf32>
    %26 = vector.shape_cast %25 : vector<1x16x128xf32> to vector<16x128xf32>
    %27 = arith.addf %24, %26 : vector<16x128xf32>
    %c0_19 = arith.constant 0 : index
    %c0_20 = arith.constant 0 : index
    %28 = vector.load %arg4[%c0_19, %c0_20] : memref<16x128xf32, #tpu.memory_space<vmem>>, vector<16x128xf32>
    tpu.vector_store %arg4[%c0_19, %c0_20], %27 {strides = array<i32>} : memref<16x128xf32, #tpu.memory_space<vmem>>, vector<16x128xf32>,
    %c0_i32_21 = arith.constant 0 : i32
    %29 = arith.cmpi eq, %arg1, %c0_i32_21 : i32
    %30 = arith.extui %29 : i1 to i32
    %c0_i32_22 = arith.constant 0 : i32
    %31 = arith.cmpi ne, %30, %c0_i32_22 : i32
    scf.if %31 {
      %c0_23 = arith.constant 0 : index
      %c0_24 = arith.constant 0 : index
      %32 = vector.load %arg4[%c0_23, %c0_24] : memref<16x128xf32, #tpu.memory_space<vmem>>, vector<16x128xf32>
      %cst = arith.constant 1.250000e-01 : f32
      %33 = vector.broadcast %cst : f32 to vector<16x128xf32>
      %34 = arith.mulf %32, %33 : vector<16x128xf32>
      %c0_25 = arith.constant 0 : index
      %c0_26 = arith.constant 0 : index
      %35 = vector.load %arg3[%c0_25, %c0_26] : memref<16x128xf32, #tpu.memory_space<vmem>>, vector<16x128xf32>
      tpu.vector_store %arg3[%c0_25, %c0_26], %34 {strides = array<i32>} : memref<16x128xf32, #tpu.memory_space<vmem>>, vector<16x128xf32>,
    } else {
    }
    return
  }
  func.func @transform_0(%arg0: i32, %arg1: i32) -> (i32, i32, i32) {
    %c0_i32 = arith.constant 0 : i32
    %c0_i32_0 = arith.constant 0 : i32
    return %arg1, %arg0, %c0_i32 : i32, i32, i32
  }
  func.func @transform_1(%arg0: i32, %arg1: i32) -> (i32, i32) {
    %c0_i32 = arith.constant 0 : i32
    %c0_i32_0 = arith.constant 0 : i32
    return %arg0, %c0_i32 : i32, i32
  }
}

</mosaic_0001>

<llo_original>
// kernel: tpu_custom_call.1
$region0: #{tpu_custom_call.1}
  #allocation0 [shape = 'u32[]', space=smem, size = 0x4, offset = 0x4, fixed_abs, tag = 'smem constant byte address 0x4 - core index']
  #allocation1 [shape = 'u32[144,128]{1,0:T(1,128)}', space=vmem, size = 0x12000, scoped, tag = 'internal scratch']
  #allocation2 [shape = 'f32[16,128]{1,0:T(8,128)}', space=vmem, size = 0x2000, scoped, tag = 'scratch operand']
  %s0 = inlined_call_operand.hbm [shape: f32[8,16,128], index: 0, kind: input, shape index: {}]
  %s1 = inlined_call_operand.hbm [shape: f32[16,128], index: 1, kind: output, shape index: {}]
  %s2 = sld [smem:[#allocation0]]
  $region26: #{tpu_custom_call.1} parent=0
    _
  %s4 = ssub.s32 1, %s2
  %s5 = scalar_select 0, %s4, %s2
  $region1: #{tpu_custom_call.1} parent=0
    #allocation3 [shape = 'u8[65536]{0}', space=vmem, size = 0x10000, scoped, tag = 'input window, operand 0, single buffered']
    #allocation4 [shape = 's32[1]{0}', space=sflag, size = 0x4, scoped, tag = 'scoped memory for tpu_custom_call.1']
    #allocation5 [shape = 's32[1]{0}', space=sflag, size = 0x4, scoped, tag = 'scoped memory for tpu_custom_call.1']
    #allocation6 [shape = 'u8[8192]{0}', space=vmem, size = 0x2000, scoped, tag = 'output window, operand 0, single buffered']
    %6 = vsyncpa [#allocation4], 0
    %7 = vsyncpa [#allocation5], 0
    // Predicated region
    $region2: #{tpu_custom_call.1} parent=1 // pred_check
      _
    $region3: #{tpu_custom_call.1} parent=1 // pred_check_branch
      %9 = sbr.rel (0) target = $region5
    $region4: #{tpu_custom_call.1} parent=1 // pred_region
      %s11 = ssub.s32 2048, 2048
      %12 = vsyncadd [#allocation4], %s11
      %s13 = sshll.u32 [#allocation3], 4
      %s14 = int_to_ptr.vmem [resolvable:$true] %s13
      %19 = dma.hbm_to_vmem [thread:$0]  %s0, 2048, %s14, [#allocation4], 128, 128, 8
    $region5: #{tpu_custom_call.1} parent=1 // pred_fallthru
      _
    // Predicated region
    $region6: #{tpu_custom_call.1} parent=1 // pred_check
      _
    $region7: #{tpu_custom_call.1} parent=1 // pred_check_branch
      %21 = sbr.rel (0) target = $region9
    $region8: #{tpu_custom_call.1} parent=1 // pred_region
      %22 = dma.done [#allocation4], 2048
    $region9: #{tpu_custom_call.1} parent=1 // pred_fallthru
      _
    %p23 = scmp.eq.s32.totalorder 0, 0
    // Predicated region
    $region10: #{tpu_custom_call.1} parent=1 // pred_check
      %p24 = pneg %p23
    $region11: #{tpu_custom_call.1} parent=1 // pred_check_branch
      %26 = sbr.rel (%p24) target = $region13
    $region12: #{tpu_custom_call.1} parent=1 // pred_region
      %27 = vst [vmem:[#allocation2] sm:$0xff] 0.0
      %28 = vst [vmem:[#allocation2 + $0x8] sm:$0xff] 0.0
    $region13: #{tpu_custom_call.1} parent=1 // pred_fallthru
      _
    %v29 = vld [vmem:[#allocation2] sm:$0xff]
    %v30 = vld [vmem:[#allocation2 + $0x8] sm:$0xff]
    %v31 = vld [vmem:[#allocation3] sm:$0xff]
    %v32 = vld [vmem:[#allocation3 + $0x8] sm:$0xff]
    %v33 = vadd.f32 %v29, %v31
    %v34 = vadd.f32 %v30, %v32
    %s35 = scalar_lea.vmem [#allocation3], 16
    %v36 = vld [vmem:[%s35] sm:$0xff]
    %v37 = vld [vmem:[%s35 + $0x8] sm:$0xff]
    %v38 = vadd.f32 %v33, %v36
    %v39 = vadd.f32 %v34, %v37
    %s40 = scalar_lea.vmem [#allocation3], 32
    %v41 = vld [vmem:[%s40] sm:$0xff]
    %v42 = vld [vmem:[%s40 + $0x8] sm:$0xff]
    %v43 = vadd.f32 %v38, %v41
    %v44 = vadd.f32 %v39, %v42
    %s45 = scalar_lea.vmem [#allocation3], 48
    %v46 = vld [vmem:[%s45] sm:$0xff]
    %v47 = vld [vmem:[%s45 + $0x8] sm:$0xff]
    %v48 = vadd.f32 %v43, %v46
    %v49 = vadd.f32 %v44, %v47
    %s50 = scalar_lea.vmem [#allocation3], 64
    %v51 = vld [vmem:[%s50] sm:$0xff]
    %v52 = vld [vmem:[%s50 + $0x8] sm:$0xff]
    %v53 = vadd.f32 %v48, %v51
    %v54 = vadd.f32 %v49, %v52
    %s55 = scalar_lea.vmem [#allocation3], 80
    %v56 = vld [vmem:[%s55] sm:$0xff]
    %v57 = vld [vmem:[%s55 + $0x8] sm:$0xff]
    %v58 = vadd.f32 %v53, %v56
    %v59 = vadd.f32 %v54, %v57
    %s60 = scalar_lea.vmem [#allocation3], 96
    %v61 = vld [vmem:[%s60] sm:$0xff]
    %v62 = vld [vmem:[%s60 + $0x8] sm:$0xff]
    %v63 = vadd.f32 %v58, %v61
    %v64 = vadd.f32 %v59, %v62
    %s65 = scalar_lea.vmem [#allocation3], 112
    %v66 = vld [vmem:[%s65] sm:$0xff]
    %v67 = vld [vmem:[%s65 + $0x8] sm:$0xff]
    %v68 = vadd.f32 %v63, %v66
    %v69 = vadd.f32 %v64, %v67
    %70 = vst [vmem:[#allocation2] sm:$0xff] %v68
    %71 = vst [vmem:[#allocation2 + $0x8] sm:$0xff] %v69
    // Predicated region
    $region14: #{tpu_custom_call.1} parent=1 // pred_check
      %p72 = pneg %p23
    $region15: #{tpu_custom_call.1} parent=1 // pred_check_branch
      %74 = sbr.rel (%p72) target = $region17
    $region16: #{tpu_custom_call.1} parent=1 // pred_region
      %v75 = vld [vmem:[#allocation2] sm:$0xff]
      %v76 = vld [vmem:[#allocation2 + $0x8] sm:$0xff]
      %v77 = vmul.f32 %v75, 0.125
      %v78 = vmul.f32 %v76, 0.125
      %79 = vst [vmem:[#allocation6] sm:$0xff] %v77
      %80 = vst [vmem:[#allocation6 + $0x8] sm:$0xff] %v78
    $region17: #{tpu_custom_call.1} parent=1 // pred_fallthru
      _
    // Predicated region
    $region18: #{tpu_custom_call.1} parent=1 // pred_check
      _
    $region19: #{tpu_custom_call.1} parent=1 // pred_check_branch
      %82 = sbr.rel (0) target = $region21
    $region20: #{tpu_custom_call.1} parent=1 // pred_region
      %s84 = ssub.s32 256, 256
      %85 = vsyncadd [#allocation5], %s84
      %s86 = sshll.u32 [#allocation6], 4
      %s87 = int_to_ptr.vmem [resolvable:$true] %s86
      %92 = dma.vmem_to_hbm [thread:$0]  %s87, 256, %s1, [#allocation5], 128, 128, 8
    $region21: #{tpu_custom_call.1} parent=1 // pred_fallthru
      _
    // Predicated region
    $region22: #{tpu_custom_call.1} parent=1 // pred_check
      _
    $region23: #{tpu_custom_call.1} parent=1 // pred_check_branch
      %94 = sbr.rel (0) target = $region25
    $region24: #{tpu_custom_call.1} parent=1 // pred_region
      %95 = dma.done [#allocation5], 256
    $region25: #{tpu_custom_call.1} parent=1 // pred_fallthru
      _
    %96 = vsyncpa [#allocation4], 1
    %97 = vsyncpa [#allocation5], 1

</llo_original>
